<compile_context>
chip_gen: v6e
topology: v6e:2x2x1
jax: 0.10.0
libtpu: 0.0.40
codegen_flags: <defaults>
</compile_context>

<pallas_src>
import functools

import jax
import jax.numpy as jnp
from jax import lax
from jax.experimental import pallas as pl
from jax.experimental.pallas import tpu as pltpu


def _round_up(x: int, m: int) -> int:
    return (x + m - 1) // m * m


def _cdist_kernel(x_ref, ct_ref, cn_ref, o_ref, *, gram_dtype=None):
    # x_ref : (TM, D)   tile of X                      (input dtype)
    # ct_ref: (D, TK)   pre-transposed centers tile    (input dtype)
    # cn_ref: (1, TK)   precomputed ||c||^2 per center (f32)
    # o_ref : (TM, TK)  output distance tile           (input dtype)
    x = x_ref[...]
    ct = ct_ref[...]

    if gram_dtype is None:
        xg, cg = x, ct
    else:
        xg, cg = x.astype(gram_dtype), ct.astype(gram_dtype)

    # (TM, D) @ (D, TK) on the MXU, f32 accumulation.  Centers were transposed
    # once in the wrapper, so no in-kernel relayout of the RHS is needed.
    gram = lax.dot_general(
        xg, cg,
        dimension_numbers=(((1,), (0,)), ((), ())),
        preferred_element_type=jnp.float32,
    )  # (TM, TK) f32

    xf = x.astype(jnp.float32)
    x_norm = jnp.sum(xf * xf, axis=1, keepdims=True)   # (TM, 1) f32
    d2 = x_norm + cn_ref[...] - 2.0 * gram
    d2 = jnp.maximum(d2, 0.0)                           # clamp(min=0)
    o_ref[...] = jnp.sqrt(d2).astype(o_ref.dtype)


def gkmeans_forward(X: jax.Array, C: jax.Array, *, tile_m: int = 1024,
                    tile_k: int = 1024, gram_dtype=None) -> jax.Array:
    """Pairwise L2 distance matrix, equivalent to GKMeans.forward (lp-norm, p=2)."""
    N, D = X.shape
    K, Dc = C.shape
    assert D == Dc, "feature dims must match"

    out_dtype = X.dtype            # torch.cdist returns the input dtype

    # Tiny-N edge case: keep every block within the array bounds on the row dim.
    n_valid = N
    if N < 8:
        X = jnp.pad(X, ((0, 8 - N), (0, 0)))
        N = 8

    # --- K tiling: lane-dense (multiple of 128); tk divides K_pad exactly.
    K_pad = _round_up(max(K, 128), 128)
    tk = min(_round_up(tile_k, 128), K_pad)
    K_pad = _round_up(K_pad, tk)

    Cp = C if K_pad == K else jnp.pad(C, ((0, K_pad - K), (0, 0)))
    # One-time wrapper transpose: centers enter the kernel as (D, K_pad), so
    # the grid-invariant RHS feeds the MXU directly (no per-step XLU work).
    CpT = Cp.T
    cf = Cp.astype(jnp.float32)
    c_norm = jnp.sum(cf * cf, axis=1, keepdims=True).T   # (1, K_pad) f32, hoisted

    # --- balanced N tiling (avoid a mostly-padded last tile).
    n_row_tiles = max(1, -(-N // max(tile_m, 8)))
    tm = _round_up(-(-N // n_row_tiles), 8)

    # --- generation-aware VMEM budget (v7x: 64 MiB/TC, v5e/v6e: 128 MiB).
    x_bytes = jnp.dtype(X.dtype).itemsize
    c_bytes = jnp.dtype(CpT.dtype).itemsize
    o_bytes = jnp.dtype(out_dtype).itemsize

    def vmem_bytes(tm_, tk_):
        return (2 * tm_ * D * x_bytes          # X tile (double-buffered)
                + 2 * tm_ * tk_ * o_bytes      # out tile (double-buffered)
                + 2 * D * tk_ * c_bytes        # centers (double-buffered alloc)
                + 2 * tk_ * 4                  # ||c||^2
                + 3 * tm_ * tk_ * 4            # f32 gram / d2 intermediates
                + (2 << 20))                   # compiler scratch headroom

    try:
        vmem_cap = int(getattr(pltpu.get_tpu_info(), "vmem_capacity_bytes",
                               64 << 20))
    except Exception:                           # best effort; stay conservative
        vmem_cap = 64 << 20
    vmem_usable = (vmem_cap * 3) // 4           # leave 25% for spills/scratch

    while vmem_bytes(tm, tk) > vmem_usable and tm > 64:
        tm = max(64, _round_up(tm // 2, 8))
    # NOTE: centers / c_norm are grid-invariant along i, so Pallas never
    # refetches them; if this budget ever gets tight, pipeline_mode=
    # pl.Buffered(1) on their BlockSpecs would also drop their second buffer.

    n_i = -(-N // tm)
    n_j = K_pad // tk
    # v7x has two TensorCores: expose >= 2 parallel grid steps when N allows.
    if n_i * n_j < 2 and N > 8:
        tm = _round_up(-(-N // 2), 8)
        n_i = -(-N // tm)

    vmem_limit = int(min(max(vmem_bytes(tm, tk), 16 << 20), vmem_usable))

    cost = pl.CostEstimate(
        flops=2 * N * K_pad * D + 6 * N * K_pad,
        transcendentals=N * K_pad,               # sqrt epilogue
        bytes_accessed=(x_bytes * N * D + c_bytes * K_pad * D
                        + 4 * K_pad + o_bytes * N * K_pad),
    )

    kernel = functools.partial(_cdist_kernel, gram_dtype=gram_dtype)

    # TODO(synk): for very large D add a third ("arbitrary") grid axis over D
    # with an f32 accumulator; for the kmeans predict() path, fuse the argmin
    # into this kernel so the full (N, K) matrix never hits HBM.
    out = pl.pallas_call(
        kernel,
        out_shape=jax.ShapeDtypeStruct((N, K_pad), out_dtype),
        grid_spec=pltpu.PrefetchScalarGridSpec(
            num_scalar_prefetch=0,
            grid=(n_i, n_j),
            in_specs=[
                pl.BlockSpec((tm, D), lambda i, j: (i, 0)),   # X row tile
                pl.BlockSpec((D, tk), lambda i, j: (0, j)),   # centers^T tile
                pl.BlockSpec((1, tk), lambda i, j: (0, j)),   # ||c||^2 tile
            ],
            out_specs=pl.BlockSpec((tm, tk), lambda i, j: (i, j)),
        ),
        compiler_params=pltpu.CompilerParams(
            dimension_semantics=("parallel", "parallel"),
            vmem_limit_bytes=vmem_limit,
        ),
        cost_estimate=cost,
    )(X, CpT, c_norm)

    if n_valid != N or K_pad != K:
        out = out[:n_valid, :K]
    return out


def _reference(X, C):
    # plain-JAX reference of torch.cdist(..., p=2)
    diff = X[:, None, :] - C[None, :, :]
    return jnp.sqrt(jnp.sum(diff * diff, axis=-1))


if __name__ == "__main__":
    key = jax.random.PRNGKey(0)
    kx, kc = jax.random.split(key)

    # Small shapes consistent with the module: N samples of dim D, K clusters.
    N, D, K = 128, 32, 8

    X = jax.random.normal(kx, (N, D), dtype=jnp.float32)
    # Deterministic synthetic cluster centers (module would kmeans++-init them).
    C = jax.random.normal(kc, (K, D), dtype=jnp.float32)

    dists = gkmeans_forward(X, C)
    dists = jax.block_until_ready(dists)

    ref = _reference(X, C)
    assert dists.shape == (N, K)
    assert dists.dtype == X.dtype          # torch.cdist dtype semantics
    assert jnp.allclose(dists, ref, atol=1e-4, rtol=1e-4)

    print("KERNEL_OK")
</pallas_src>

<mosaic_0001>
module attributes {stable_mosaic.version = 11 : i64} {
  func.func @_cdist_kernel(%arg0: i32, %arg1: i32, %arg2: memref<64x32xf32, #tpu.memory_space<vmem>>, %arg3: memref<32x128xf32, #tpu.memory_space<vmem>>, %arg4: memref<1x128xf32, #tpu.memory_space<vmem>>, %arg5: memref<64x128xf32, #tpu.memory_space<vmem>>) attributes {dimension_semantics = [#tpu.dimension_semantics<parallel>, #tpu.dimension_semantics<parallel>], iteration_bounds = array<i64: 2, 1>, scalar_prefetch = 0 : i64, scratch_operands = 0 : i64, tpu.core_type = #tpu.core_type<tc>, window_params = [{transform_indices = @transform_0, window_bounds = array<i64: 64, 32>}, {transform_indices = @transform_1, window_bounds = array<i64: 32, 128>}, {transform_indices = @transform_2, window_bounds = array<i64: 1, 128>}, {transform_indices = @transform_3, window_bounds = array<i64: 64, 128>}]} {
    %c0 = arith.constant 0 : index
    %c0_0 = arith.constant 0 : index
    %0 = vector.load %arg2[%c0, %c0_0] : memref<64x32xf32, #tpu.memory_space<vmem>>, vector<64x32xf32>
    %c0_1 = arith.constant 0 : index
    %c0_2 = arith.constant 0 : index
    %1 = vector.load %arg3[%c0_1, %c0_2] : memref<32x128xf32, #tpu.memory_space<vmem>>, vector<32x128xf32>
    %cst = arith.constant dense<0.000000e+00> : vector<64x128xf32>
    %2 = tpu.matmul %0, %1, %cst {dimension_numbers = #tpu.dot_dimension_numbers<[1], [0], [0], [1], [0, 0, 1, 1], [], []>} : vector<64x32xf32>, vector<32x128xf32>, vector<64x128xf32> -> vector<64x128xf32>
    %3 = arith.mulf %0, %0 : vector<64x32xf32>
    %cst_3 = arith.constant dense<0.000000e+00> : vector<64xf32>
    %4 = vector.multi_reduction <add>, %3, %cst_3 [1] : vector<64x32xf32> to vector<64xf32>
    %5 = vector.shape_cast %4 : vector<64xf32> to vector<64x1xf32>
    %c0_4 = arith.constant 0 : index
    %c0_5 = arith.constant 0 : index
    %6 = vector.load %arg4[%c0_4, %c0_5] : memref<1x128xf32, #tpu.memory_space<vmem>>, vector<1x128xf32>
    %7 = vector.broadcast %5 : vector<64x1xf32> to vector<64x128xf32>
    %8 = vector.broadcast %6 : vector<1x128xf32> to vector<64x128xf32>
    %9 = arith.addf %7, %8 : vector<64x128xf32>
    %cst_6 = arith.constant 2.000000e+00 : f32
    %10 = vector.broadcast %cst_6 : f32 to vector<64x128xf32>
    %11 = arith.mulf %10, %2 : vector<64x128xf32>
    %12 = arith.subf %9, %11 : vector<64x128xf32>
    %cst_7 = arith.constant 0.000000e+00 : f32
    %13 = vector.broadcast %cst_7 : f32 to vector<64x128xf32>
    %14 = arith.maximumf %12, %13 : vector<64x128xf32>
    %15 = math.sqrt %14 : vector<64x128xf32>
    %c0_8 = arith.constant 0 : index
    %c0_9 = arith.constant 0 : index
    %16 = vector.load %arg5[%c0_8, %c0_9] : memref<64x128xf32, #tpu.memory_space<vmem>>, vector<64x128xf32>
    tpu.vector_store %arg5[%c0_8, %c0_9], %15 {strides = array<i32>} : memref<64x128xf32, #tpu.memory_space<vmem>>, vector<64x128xf32>,
    return
  }
  func.func @transform_0(%arg0: i32, %arg1: i32) -> (i32, i32) {
    %c0_i32 = arith.constant 0 : i32
    %c0_i32_0 = arith.constant 0 : i32
    return %arg0, %c0_i32 : i32, i32
  }
  func.func @transform_1(%arg0: i32, %arg1: i32) -> (i32, i32) {
    %c0_i32 = arith.constant 0 : i32
    %c0_i32_0 = arith.constant 0 : i32
    return %c0_i32, %arg1 : i32, i32
  }
  func.func @transform_2(%arg0: i32, %arg1: i32) -> (i32, i32) {
    %c0_i32 = arith.constant 0 : i32
    %c0_i32_0 = arith.constant 0 : i32
    return %c0_i32, %arg1 : i32, i32
  }
  func.func @transform_3(%arg0: i32, %arg1: i32) -> (i32, i32) {
    %c0_i32 = arith.constant 0 : i32
    return %arg0, %arg1 : i32, i32
  }
}

</mosaic_0001>

<llo_original>
// kernel: tpu_custom_call.1
$region0: #{tpu_custom_call.1}
  #allocation0 [shape = 'u32[]', space=smem, size = 0x4, offset = 0x4, fixed_abs, tag = 'smem constant byte address 0x4 - core index']
  #allocation1 [shape = 'u32[144,128]{1,0:T(1,128)}', space=vmem, size = 0x12000, scoped, tag = 'internal scratch']
  %s0 = inlined_call_operand.vmem [shape: f32[128,32], index: 0, kind: input, shape index: {}]
  %s1 = inlined_call_operand.vmem [shape: f32[32,128], index: 1, kind: input, shape index: {}]
  %s2 = inlined_call_operand.vmem [shape: f32[1,128], index: 2, kind: input, shape index: {}]
  %s3 = inlined_call_operand.hbm [shape: f32[128,128], index: 3, kind: output, shape index: {}]
  %s4 = sld [smem:[#allocation0]]
  $region45: #{tpu_custom_call.1} parent=0
    _
  %s6 = ssub.s32 1, %s4
  %s7 = scalar_select 0, %s6, %s4
  $region1: #{tpu_custom_call.1} parent=0
    #allocation2 [shape = 'u8[65536]{0}', space=vmem, size = 0x10000, scoped, tag = 'output window, operand 0']
    #allocation3 [shape = 's32[2]{0}', space=sflag, size = 0x8, scoped, tag = 'scoped memory for tpu_custom_call.1']
    %8 = vsyncpa [#allocation3], 0
    %s9 = scalar_lea.sflag [#allocation3], 1
    %10 = vsyncpa %s9, 0
    loop: start=0, step=1, limit=4
    $region2: #{tpu_custom_call.1} parent=1 // loop_pre_header
      _
    $region3: #{tpu_custom_call.1} parent=1 // loop_header
      %s12 = sphi 0, %s16
      %p13 = scmp.ge.s32.totalorder %s12, 4
      %s19 = sphi 0, %s31
      %s20 = sphi 0, %s27
      %s21 = sphi 0, %s19
      %s22 = sphi 0, %s20
      %s23 = sphi 0, %s21
      %s24 = sphi 0, %s22
      %s34 = sphi 0, %s36
      %s37 = sphi 0, %s34
      %s38 = sphi 0, %s37
      %s54 = sphi 0, %s38
      %s60 = sphi 0, %s62
      %s63 = sphi 0, %s60
      %s64 = sphi 0, %s63
      %s80 = sphi 0, %s64
      %s86 = sphi 0, %s88
      %s89 = sphi 0, %s86
      %s90 = sphi 0, %s89
      %s106 = sphi 0, %s90
      %s114 = sphi 0, %s116
      %s117 = sphi 0, %s114
      %s118 = sphi 0, %s117
      %s134 = sphi 0, %s118
    $region4: #{tpu_custom_call.1} parent=1 // loop_header_branch
      %15 = sbr.rel (%p13) target = $region8
    $region5: #{tpu_custom_call.1} parent=1 // loop_body
      %s17 = ssub.s32 %s12, 1
      %s18 = ssub.s32 %s12, 2
      %s25 = sadd.s32 1, %s20
      %p26 = scmp.ge.s32.totalorder %s25, 1
      %s27 = scalar_select %p26, 0, %s25
      %s28 = sadd.s32 1, %s19
      %s29 = scalar_select %p26, %s28, %s19
      %p30 = scmp.ge.s32.totalorder %s29, 2
      %s31 = scalar_select %p30, 0, %s29
      %s32 = ssub.s32 %s19, %s31
      %p33 = scmp.eq.s32.totalorder %s32, 0
      %s35 = sadd.s32 %s34, 1
      %s36 = scalar_select %p33, %s34, %s35
      %p39 = pneg %p33
      %p40 = scmp.eq.s32.totalorder %s12, 1
      %p41 = por %p39, %p40
      %p42 = scmp.ne.s32.totalorder %s34, %s37
      %p43 = scmp.eq.s32.totalorder %s12, 0
      %p44 = por %p42, %p43
      %p45 = scmp.ne.s32.totalorder %s34, %s37
      %p46 = scmp.eq.s32.totalorder %s17, 1
      %p47 = por %p45, %p46
      %p48 = scmp.ne.s32.totalorder %s37, %s38
      %p49 = scmp.eq.s32.totalorder %s17, 0
      %p50 = por %p48, %p49
      %p51 = scmp.ne.s32.totalorder %s37, %s38
      %p52 = scmp.eq.s32.totalorder %s18, 1
      %p53 = por %p51, %p52
      %p55 = scmp.ne.s32.totalorder %s38, %s54
      %p56 = scmp.eq.s32.totalorder %s18, 0
      %p57 = por %p55, %p56
      %s58 = ssub.s32 %s20, %s27
      %p59 = scmp.eq.s32.totalorder %s58, 0
      %s61 = sadd.s32 %s60, 1
      %s62 = scalar_select %p59, %s60, %s61
      %p65 = pneg %p59
      %p66 = scmp.eq.s32.totalorder %s12, 1
      %p67 = por %p65, %p66
      %p68 = scmp.ne.s32.totalorder %s60, %s63
      %p69 = scmp.eq.s32.totalorder %s12, 0
      %p70 = por %p68, %p69
      %p71 = scmp.ne.s32.totalorder %s60, %s63
      %p72 = scmp.eq.s32.totalorder %s17, 1
      %p73 = por %p71, %p72
      %p74 = scmp.ne.s32.totalorder %s63, %s64
      %p75 = scmp.eq.s32.totalorder %s17, 0
      %p76 = por %p74, %p75
      %p77 = scmp.ne.s32.totalorder %s63, %s64
      %p78 = scmp.eq.s32.totalorder %s18, 1
      %p79 = por %p77, %p78
      %p81 = scmp.ne.s32.totalorder %s64, %s80
      %p82 = scmp.eq.s32.totalorder %s18, 0
      %p83 = por %p81, %p82
      %s84 = ssub.s32 %s20, %s27
      %p85 = scmp.eq.s32.totalorder %s84, 0
      %s87 = sadd.s32 %s86, 1
      %s88 = scalar_select %p85, %s86, %s87
      %p91 = pneg %p85
      %p92 = scmp.eq.s32.totalorder %s12, 1
      %p93 = por %p91, %p92
      %p94 = scmp.ne.s32.totalorder %s86, %s89
      %p95 = scmp.eq.s32.totalorder %s12, 0
      %p96 = por %p94, %p95
      %p97 = scmp.ne.s32.totalorder %s86, %s89
      %p98 = scmp.eq.s32.totalorder %s17, 1
      %p99 = por %p97, %p98
      %p100 = scmp.ne.s32.totalorder %s89, %s90
      %p101 = scmp.eq.s32.totalorder %s17, 0
      %p102 = por %p100, %p101
      %p103 = scmp.ne.s32.totalorder %s89, %s90
      %p104 = scmp.eq.s32.totalorder %s18, 1
      %p105 = por %p103, %p104
      %p107 = scmp.ne.s32.totalorder %s90, %s106
      %p108 = scmp.eq.s32.totalorder %s18, 0
      %p109 = por %p107, %p108
      %s110 = ssub.s32 %s19, %s31
      %s111 = ssub.s32 %s20, %s27
      %s112 = sor.u32 %s110, %s111
      %p113 = scmp.eq.s32.totalorder %s112, 0
      %s115 = sadd.s32 %s114, 1
      %s116 = scalar_select %p113, %s114, %s115
      %p119 = pneg %p113
      %p120 = scmp.eq.s32.totalorder %s12, 1
      %p121 = por %p119, %p120
      %p122 = scmp.ne.s32.totalorder %s114, %s117
      %p123 = scmp.eq.s32.totalorder %s12, 0
      %p124 = por %p122, %p123
      %p125 = scmp.ne.s32.totalorder %s114, %s117
      %p126 = scmp.eq.s32.totalorder %s17, 1
      %p127 = por %p125, %p126
      %p128 = scmp.ne.s32.totalorder %s117, %s118
      %p129 = scmp.eq.s32.totalorder %s17, 0
      %p130 = por %p128, %p129
      %p131 = scmp.ne.s32.totalorder %s117, %s118
      %p132 = scmp.eq.s32.totalorder %s18, 1
      %p133 = por %p131, %p132
      %p135 = scmp.ne.s32.totalorder %s118, %s134
      %p136 = scmp.eq.s32.totalorder %s18, 0
      %p137 = por %p135, %p136
      %p138 = scmp.le.s32.totalorder 1, %s12
      %p139 = scmp.lt.s32.totalorder %s12, 3
      %p140 = pnand %p138, %p139
      %p141 = pneg %p140
      // Predicated region
      $region9: #{tpu_custom_call.1} parent=5 // pred_check
        _
      $region10: #{tpu_custom_call.1} parent=5 // pred_check_branch
        %143 = sbr.rel (%p140) target = $region12
      $region11: #{tpu_custom_call.1} parent=5 // pred_region
        %s144 = ssub.s32 %s12, 1
        // Predicated region
        $region13: #{tpu_custom_call.1} parent=11 // pred_check
          %p145 = pneg %p76
        $region14: #{tpu_custom_call.1} parent=11 // pred_check_branch
          %147 = sbr.rel (%p145) target = $region16
        $region15: #{tpu_custom_call.1} parent=11 // pred_region
          %p148 = scmp.lt.s32.totalorder %s22, 0
          %s149 = scalar_select %p148, %s22, 0
          %s150 = smul.addr %s149, 8
          %s151 = scalar_lea.vmem %s1, %s150
        $region16: #{tpu_custom_call.1} parent=11 // pred_fallthru
          _
        // Predicated region
        $region17: #{tpu_custom_call.1} parent=11 // pred_check
          %p152 = pneg %p102
        $region18: #{tpu_custom_call.1} parent=11 // pred_check_branch
          %154 = sbr.rel (%p152) target = $region20
        $region19: #{tpu_custom_call.1} parent=11 // pred_region
          %p155 = scmp.lt.s32.totalorder %s22, 0
          %s156 = scalar_select %p155, %s22, 0
          %s157 = scalar_lea.vmem %s2, %s156
        $region20: #{tpu_custom_call.1} parent=11 // pred_fallthru
          _
      $region12: #{tpu_custom_call.1} parent=5 // pred_fallthru
        _
      %p158 = scmp.lt.s32.totalorder %s12, 2
      // Predicated region
      $region21: #{tpu_custom_call.1} parent=5 // pred_check
        %p159 = pneg %p158
      $region22: #{tpu_custom_call.1} parent=5 // pred_check_branch
        %161 = sbr.rel (%p159) target = $region24
      $region23: #{tpu_custom_call.1} parent=5 // pred_region
        // Predicated region
        $region25: #{tpu_custom_call.1} parent=23 // pred_check
          %p162 = pneg %p44
        $region26: #{tpu_custom_call.1} parent=23 // pred_check_branch
          %164 = sbr.rel (%p162) target = $region28
        $region27: #{tpu_custom_call.1} parent=23 // pred_region
          %s165 = smul.u32 8, %s19
          %p166 = scmp.lt.s32.totalorder %s165, 15
          %s167 = scalar_select %p166, %s165, 15
          %s168 = smul.addr %s167, 8
          %s169 = scalar_lea.vmem %s0, %s168
          %s170 = smul.u32 8, %s19
        $region28: #{tpu_custom_call.1} parent=23 // pred_fallthru
          _
      $region24: #{tpu_custom_call.1} parent=5 // pred_fallthru
        _
      %p171 = scmp.le.s32.totalorder 1, %s12
      %p172 = scmp.lt.s32.totalorder %s12, 3
      %p173 = pnand %p171, %p172
      %p174 = pneg %p173
      // Predicated region
      $region29: #{tpu_custom_call.1} parent=5 // pred_check
        _
      $region30: #{tpu_custom_call.1} parent=5 // pred_check_branch
        %176 = sbr.rel (%p173) target = $region32
      $region31: #{tpu_custom_call.1} parent=5 // pred_region
        %s177 = ssub.s32 %s12, 1
        %s178 = smul.u32 8, %s21
        %p179 = scmp.lt.s32.totalorder %s178, 15
        %s180 = scalar_select %p179, %s178, 15
        %s181 = smul.addr %s180, 8
        %s182 = scalar_lea.vmem %s0, %s181
        %p183 = pneg %p50
        %p184 = pneg %p47
        %p185 = scmp.lt.s32.totalorder %s22, 0
        %s186 = scalar_select %p185, %s22, 0
        %s187 = smul.addr %s186, 8
        %s188 = scalar_lea.vmem %s1, %s187
        %p189 = pneg %p76
        %p190 = pneg %p73
        %p191 = scmp.lt.s32.totalorder %s22, 0
        %s192 = scalar_select %p191, %s22, 0
        %s193 = scalar_lea.vmem %s2, %s192
        %p194 = pneg %p102
        %p195 = pneg %p99
        %p196 = pneg %p130
        %p197 = pneg %p127
        %s198 = sand.u32 %s117, 1
        %s199 = scalar_lea.sflag [#allocation3], %s198
        %s200 = sand.u32 %s117, 1
        %s201 = smul.addr %s200, 64
        %s202 = scalar_lea.vmem [#allocation2], %s201
        %s203 = smul.u32 8, %s21
        %p204 = scmp.lt.s32.totalorder %s203, 15
        %s205 = scalar_select %p204, %s203, 15
        %s206 = smul.addr %s205, 8
        %s207 = scalar_lea.vmem %s0, %s206
        %s208 = smul.u32 8, %s21
        %p209 = scmp.lt.s32.totalorder %s22, 0
        %s210 = scalar_select %p209, %s22, 0
        %s211 = smul.addr %s210, 8
        %s212 = scalar_lea.vmem %s1, %s211
        %p213 = scmp.lt.s32.totalorder %s22, 0
        %s214 = scalar_select %p213, %s22, 0
        %s215 = scalar_lea.vmem %s2, %s214
        %s216 = smul.u32 8, %s21
        %v217 = vld [vmem:[%s207] sm:$0xff]
        %v218 = vld [vmem:[%s207 + $0x8] sm:$0xff]
        %v219 = vld [vmem:[%s207 + $0x10] sm:$0xff]
        %v220 = vld [vmem:[%s207 + $0x18] sm:$0xff]
        %v221 = vld [vmem:[%s207 + $0x20] sm:$0xff]
        %v222 = vld [vmem:[%s207 + $0x28] sm:$0xff]
        %v223 = vld [vmem:[%s207 + $0x30] sm:$0xff]
        %v224 = vld [vmem:[%s207 + $0x38] sm:$0xff]
        %v225 = vld [vmem:[%s212] sm:$0xff]
        %v226 = vld [vmem:[%s212 + $0x8] sm:$0xff]
        %v227 = vld [vmem:[%s212 + $0x10] sm:$0xff]
        %v228 = vld [vmem:[%s212 + $0x18] sm:$0xff]
        %vm229 = vcmask 261120
        %v231 = vsel %vm229, %v217, 0
        %v234 = vsel %vm229, %v218, 0
        %v237 = vsel %vm229, %v219, 0
        %v240 = vsel %vm229, %v220, 0
        %v243 = vsel %vm229, %v221, 0
        %v246 = vsel %vm229, %v222, 0
        %v249 = vsel %vm229, %v223, 0
        %v252 = vsel %vm229, %v224, 0
        %254 = vmatprep.subr.mxu0 0.0
        %255 = vmatpush1.msra.mxu0 0.0
        %256 = vmatprep.subr.mxu0 0.0
        %257 = vmatpush1.msra.mxu0 0.0
        %258 = vmatprep.subr.mxu0 0.0
        %259 = vmatpush1.msra.mxu0 0.0
        %260 = vmatprep.subr.mxu0 0.0
        %261 = vmatpush1.msra.mxu0 0.0
        %262 = vmatprep.subr.mxu0 0.0
        %263 = vmatpush1.msra.mxu0 0.0
        %264 = vmatprep.subr.mxu0 0.0
        %265 = vmatpush1.msra.mxu0 0.0
        %266 = vmatprep.subr.mxu0 0.0
        %267 = vmatpush1.msra.mxu0 0.0
        %268 = vmatprep.subr.mxu0 0.0
        %269 = vmatpush1.msra.mxu0 0.0
        %270 = vmatprep.subr.mxu0 0.0
        %271 = vmatpush1.msra.mxu0 0.0
        %272 = vmatprep.subr.mxu0 0.0
        %273 = vmatpush1.msra.mxu0 0.0
        %274 = vmatprep.subr.mxu0 0.0
        %275 = vmatpush1.msra.mxu0 0.0
        %276 = vmatprep.subr.mxu0 0.0
        %277 = vmatpush1.msra.mxu0 0.0
        %278 = vmatprep.subr.mxu0 0.0
        %279 = vmatpush1.msra.mxu0 %v228
        %280 = vmatprep.subr.mxu0 0.0
        %281 = vmatpush1.msra.mxu0 %v227
        %282 = vmatprep.subr.mxu0 0.0
        %283 = vmatpush1.msra.mxu0 %v226
        %284 = vmatprep.subr.mxu0 0.0
        %285 = vmatpush1.msra.mxu0 %v225
        %286 = vmatprep.subr.mxu0 0.0
        %287 = vmatpush2.msra.mxu0 0.0
        %288 = vmatprep.subr.mxu0 0.0
        %289 = vmatpush2.msra.mxu0 0.0
        %290 = vmatprep.subr.mxu0 0.0
        %291 = vmatpush2.msra.mxu0 0.0
        %292 = vmatprep.subr.mxu0 0.0
        %293 = vmatpush2.msra.mxu0 0.0
        %294 = vmatprep.subr.mxu0 0.0
        %295 = vmatpush2.msra.mxu0 0.0
        %296 = vmatprep.subr.mxu0 0.0
        %297 = vmatpush2.msra.mxu0 0.0
        %298 = vmatprep.subr.mxu0 0.0
        %299 = vmatpush2.msra.mxu0 0.0
        %300 = vmatprep.subr.mxu0 0.0
        %301 = vmatpush2.msra.mxu0 0.0
        %302 = vmatprep.subr.mxu0 0.0
        %303 = vmatpush2.msra.mxu0 0.0
        %304 = vmatprep.subr.mxu0 0.0
        %305 = vmatpush2.msra.mxu0 0.0
        %306 = vmatprep.subr.mxu0 0.0
        %307 = vmatpush2.msra.mxu0 0.0
        %308 = vmatprep.subr.mxu0 0.0
        %309 = vmatpush2.msra.mxu0 0.0
        %310 = vmatprep.subr.mxu0 0.0
        %311 = vmatpush2.msra.mxu0 0.0
        %312 = vmatprep.subr.mxu0 0.0
        %313 = vmatpush2.msra.mxu0 0.0
        %314 = vmatprep.subr.mxu0 0.0
        %315 = vmatpush2.msra.mxu0 0.0
        %316 = vmatprep.subr.mxu0 0.0
        %317 = vmatpush2.msra.mxu0 0.0
        %318 = vmatprep.mubr.f32.mxu0 0.0
        %319 = vmatmul.mubr.f32.gmra.mxu0 %v231
        %v320 = vpop.f32.mrf.mxu0
        %v321 = vadd.f32 0.0, %v320
        %v322 = vpop.f32.mrf.mxu0
        %323 = vmatprep.mubr.f32.mxu0 0.0
        %324 = vmatmul.mubr.f32.gmra.mxu0 %v234
        %v325 = vpop.f32.mrf.mxu0
        %v326 = vadd.f32 0.0, %v325
        %v327 = vpop.f32.mrf.mxu0
        %328 = vmatprep.mubr.f32.mxu0 0.0
        %329 = vmatmul.mubr.f32.gmra.mxu0 %v237
        %v330 = vpop.f32.mrf.mxu0
        %v331 = vadd.f32 0.0, %v330
        %v332 = vpop.f32.mrf.mxu0
        %333 = vmatprep.mubr.f32.mxu0 0.0
        %334 = vmatmul.mubr.f32.gmra.mxu0 %v240
        %v335 = vpop.f32.mrf.mxu0
        %v336 = vadd.f32 0.0, %v335
        %v337 = vpop.f32.mrf.mxu0
        %338 = vmatprep.mubr.f32.mxu0 0.0
        %339 = vmatmul.mubr.f32.gmra.mxu0 %v243
        %v340 = vpop.f32.mrf.mxu0
        %v341 = vadd.f32 0.0, %v340
        %v342 = vpop.f32.mrf.mxu0
        %343 = vmatprep.mubr.f32.mxu0 0.0
        %344 = vmatmul.mubr.f32.gmra.mxu0 %v246
        %v345 = vpop.f32.mrf.mxu0
        %v346 = vadd.f32 0.0, %v345
        %v347 = vpop.f32.mrf.mxu0
        %348 = vmatprep.mubr.f32.mxu0 0.0
        %349 = vmatmul.mubr.f32.gmra.mxu0 %v249
        %v350 = vpop.f32.mrf.mxu0
        %v351 = vadd.f32 0.0, %v350
        %v352 = vpop.f32.mrf.mxu0
        %353 = vmatprep.mubr.f32.mxu0 0.0
        %354 = vmatmul.mubr.f32.gmra.mxu0 %v252
        %v355 = vpop.f32.mrf.mxu0
        %v356 = vadd.f32 0.0, %v355
        %v357 = vpop.f32.mrf.mxu0
        %358 = vdwg.mxu0
        %v359 = vmul.f32 %v217, %v217
        %v360 = vmul.f32 %v218, %v218
        %v361 = vmul.f32 %v219, %v219
        %v362 = vmul.f32 %v220, %v220
        %v363 = vmul.f32 %v221, %v221
        %v364 = vmul.f32 %v222, %v222
        %v365 = vmul.f32 %v223, %v223
        %v366 = vmul.f32 %v224, %v224
        %v367 = vsel %vm229, %v359, 0.0
        %368 = vadd.xlane.f32.xlu0 %v367
        %v369 = vpop.xlane.xlu0 %368
        %v370 = vsel %vm229, %v360, 0.0
        %371 = vadd.xlane.f32.xlu0 %v370
        %v372 = vpop.xlane.xlu0 %371
        %v373 = vsel %vm229, %v361, 0.0
        %374 = vadd.xlane.f32.xlu0 %v373
        %v375 = vpop.xlane.xlu0 %374
        %v376 = vsel %vm229, %v362, 0.0
        %377 = vadd.xlane.f32.xlu0 %v376
        %v378 = vpop.xlane.xlu0 %377
        %v379 = vsel %vm229, %v363, 0.0
        %380 = vadd.xlane.f32.xlu0 %v379
        %v381 = vpop.xlane.xlu0 %380
        %v382 = vsel %vm229, %v364, 0.0
        %383 = vadd.xlane.f32.xlu0 %v382
        %v384 = vpop.xlane.xlu0 %383
        %v385 = vsel %vm229, %v365, 0.0
        %386 = vadd.xlane.f32.xlu0 %v385
        %v387 = vpop.xlane.xlu0 %386
        %v388 = vsel %vm229, %v366, 0.0
        %389 = vadd.xlane.f32.xlu0 %v388
        %v390 = vpop.xlane.xlu0 %389
        %v391 = vld [vmem:[%s215] sm:$0x1]
        %v393 = vlaneseq
        %v394 = vshrl.u32 %v393, 7
        %v395 = vsub.s32 0, %v394
        %v396 = vrot.slane %v391, %v395
        %v398 = vadd.f32 %v369, %v396
        %v399 = vadd.f32 %v372, %v396
        %v400 = vadd.f32 %v375, %v396
        %v401 = vadd.f32 %v378, %v396
        %v402 = vadd.f32 %v381, %v396
        %v403 = vadd.f32 %v384, %v396
        %v404 = vadd.f32 %v387, %v396
        %v405 = vadd.f32 %v390, %v396
        %v406 = vmul.f32 %v321, 2.0
        %v407 = vmul.f32 %v326, 2.0
        %v408 = vmul.f32 %v331, 2.0
        %v409 = vmul.f32 %v336, 2.0
        %v410 = vmul.f32 %v341, 2.0
        %v411 = vmul.f32 %v346, 2.0
        %v412 = vmul.f32 %v351, 2.0
        %v413 = vmul.f32 %v356, 2.0
        %v414 = vsub.f32 %v398, %v406
        %v415 = vsub.f32 %v399, %v407
        %v416 = vsub.f32 %v400, %v408
        %v417 = vsub.f32 %v401, %v409
        %v418 = vsub.f32 %v402, %v410
        %v419 = vsub.f32 %v403, %v411
        %v420 = vsub.f32 %v404, %v412
        %v421 = vsub.f32 %v405, %v413
        %v422 = vmax.f32 %v414, 0.0
        %v423 = vmax.f32 %v415, 0.0
        %v424 = vmax.f32 %v416, 0.0
        %v425 = vmax.f32 %v417, 0.0
        %v426 = vmax.f32 %v418, 0.0
        %v427 = vmax.f32 %v419, 0.0
        %v428 = vmax.f32 %v420, 0.0
        %v429 = vmax.f32 %v421, 0.0
        %v430 = vrsqrt.pop %v422
        %v431 = vmul.f32 %v422, %v430
        %vm432 = vcmp.eq.f32.partialorder %v422, inf
        %v433 = vsel %vm432, %v422, %v431
        %vm434 = vcmp.eq.f32.partialorder %v422, 0.0
        %v435 = vand.u32 %v422, 2147483648
        %v436 = vsel %vm434, %v435, %v433
        %v437 = vrsqrt.pop %v423
        %v438 = vmul.f32 %v423, %v437
        %vm439 = vcmp.eq.f32.partialorder %v423, inf
        %v440 = vsel %vm439, %v423, %v438
        %vm441 = vcmp.eq.f32.partialorder %v423, 0.0
        %v442 = vand.u32 %v423, 2147483648
        %v443 = vsel %vm441, %v442, %v440
        %v444 = vrsqrt.pop %v424
        %v445 = vmul.f32 %v424, %v444
        %vm446 = vcmp.eq.f32.partialorder %v424, inf
        %v447 = vsel %vm446, %v424, %v445
        %vm448 = vcmp.eq.f32.partialorder %v424, 0.0
        %v449 = vand.u32 %v424, 2147483648
        %v450 = vsel %vm448, %v449, %v447
        %v451 = vrsqrt.pop %v425
        %v452 = vmul.f32 %v425, %v451
        %vm453 = vcmp.eq.f32.partialorder %v425, inf
        %v454 = vsel %vm453, %v425, %v452
        %vm455 = vcmp.eq.f32.partialorder %v425, 0.0
        %v456 = vand.u32 %v425, 2147483648
        %v457 = vsel %vm455, %v456, %v454
        %v458 = vrsqrt.pop %v426
        %v459 = vmul.f32 %v426, %v458
        %vm460 = vcmp.eq.f32.partialorder %v426, inf
        %v461 = vsel %vm460, %v426, %v459
        %vm462 = vcmp.eq.f32.partialorder %v426, 0.0
        %v463 = vand.u32 %v426, 2147483648
        %v464 = vsel %vm462, %v463, %v461
        %v465 = vrsqrt.pop %v427
        %v466 = vmul.f32 %v427, %v465
        %vm467 = vcmp.eq.f32.partialorder %v427, inf
        %v468 = vsel %vm467, %v427, %v466
        %vm469 = vcmp.eq.f32.partialorder %v427, 0.0
        %v470 = vand.u32 %v427, 2147483648
        %v471 = vsel %vm469, %v470, %v468
        %v472 = vrsqrt.pop %v428
        %v473 = vmul.f32 %v428, %v472
        %vm474 = vcmp.eq.f32.partialorder %v428, inf
        %v475 = vsel %vm474, %v428, %v473
        %vm476 = vcmp.eq.f32.partialorder %v428, 0.0
        %v477 = vand.u32 %v428, 2147483648
        %v478 = vsel %vm476, %v477, %v475
        %v479 = vrsqrt.pop %v429
        %v480 = vmul.f32 %v429, %v479
        %vm481 = vcmp.eq.f32.partialorder %v429, inf
        %v482 = vsel %vm481, %v429, %v480
        %vm483 = vcmp.eq.f32.partialorder %v429, 0.0
        %v484 = vand.u32 %v429, 2147483648
        %v485 = vsel %vm483, %v484, %v482
        %486 = vst [vmem:[%s202] sm:$0xff] %v436
        %487 = vst [vmem:[%s202 + $0x8] sm:$0xff] %v443
        %488 = vst [vmem:[%s202 + $0x10] sm:$0xff] %v450
        %489 = vst [vmem:[%s202 + $0x18] sm:$0xff] %v457
        %490 = vst [vmem:[%s202 + $0x20] sm:$0xff] %v464
        %491 = vst [vmem:[%s202 + $0x28] sm:$0xff] %v471
        %492 = vst [vmem:[%s202 + $0x30] sm:$0xff] %v478
        %493 = vst [vmem:[%s202 + $0x38] sm:$0xff] %v485
        %s494 = sand.u32 %s117, 1
        %s495 = scalar_lea.sflag [#allocation3], %s494
        %s496 = sand.u32 %s117, 1
        %s497 = smul.addr %s496, 64
        %s498 = scalar_lea.vmem [#allocation2], %s497
        // Predicated region
        $region33: #{tpu_custom_call.1} parent=31 // pred_check
          %p499 = pneg %p127
        $region34: #{tpu_custom_call.1} parent=31 // pred_check_branch
          %501 = sbr.rel (%p499) target = $region36
        $region35: #{tpu_custom_call.1} parent=31 // pred_region
          %s502 = smul.u32 8, %s21
          %s504 = ssub.s32 1024, 1024
          %505 = vsyncadd %s495, %s504
          %s506 = sadd.s32 %s22, %s502
          %s507 = smul.addr %s506, 128
          %s508 = scalar_lea.hbm %s3, %s507
          %s509 = sshll.u32 %s498, 4
          %s510 = int_to_ptr.vmem [resolvable:$true] %s509
          %515 = dma.vmem_to_hbm [thread:$0]  %s510, 1024, %s508, %s495, 128, 128, 8
        $region36: #{tpu_custom_call.1} parent=31 // pred_fallthru
          _
      $region32: #{tpu_custom_call.1} parent=5 // pred_fallthru
        _
      %p516 = scmp.le.s32.totalorder 2, %s12
      // Predicated region
      $region37: #{tpu_custom_call.1} parent=5 // pred_check
        %p517 = pneg %p516
      $region38: #{tpu_custom_call.1} parent=5 // pred_check_branch
        %519 = sbr.rel (%p517) target = $region40
      $region39: #{tpu_custom_call.1} parent=5 // pred_region
        %s520 = ssub.s32 %s12, 2
        // Predicated region
        $region41: #{tpu_custom_call.1} parent=39 // pred_check
          %p521 = pneg %p133
        $region42: #{tpu_custom_call.1} parent=39 // pred_check_branch
          %523 = sbr.rel (%p521) target = $region44
        $region43: #{tpu_custom_call.1} parent=39 // pred_region
          %s524 = sand.u32 %s118, 1
          %s525 = scalar_lea.sflag [#allocation3], %s524
          %s526 = sand.u32 %s118, 1
          %s527 = smul.addr %s526, 64
          %s528 = scalar_lea.vmem [#allocation2], %s527
          %529 = dma.done %s525, 1024
        $region44: #{tpu_custom_call.1} parent=39 // pred_fallthru
          _
      $region40: #{tpu_custom_call.1} parent=5 // pred_fallthru
        _
    $region6: #{tpu_custom_call.1} parent=1 // loop_footer
      %s16 = sadd.s32 1, %s12
    $region7: #{tpu_custom_call.1} parent=1 // loop_footer_branch
      %11 = sbr.rel target = $region3
    $region8: #{tpu_custom_call.1} parent=1 // loop_exit
      _
    %530 = vsyncpa [#allocation3], 1
    %s531 = scalar_lea.sflag [#allocation3], 1
    %532 = vsyncpa %s531, 1

</llo_original>
